<compile_context>
chip_gen: v7x
topology: tpu7x:2x2x1
jax: 0.10.0
libtpu: 0.0.40
codegen_flags: <defaults>
</compile_context>

<pallas_src>
import functools

import jax
import jax.numpy as jnp
from jax.experimental import pallas as pl
from jax.experimental.pallas import tpu as pltpu


_MAXPOOL_IN_BLOCK_BUDGET = 4 << 20   # ~4 MiB input block per grid step
_BILINEAR_VMEM_BUDGET = 16 << 20     # per-step in+out (double-buffered) + temps
_VMEM_LIMIT_BYTES = 48 << 20         # raise scoped VMEM (v5e default is 16 MiB)
_MIN_GRID_STEPS = 4                  # keep >=2 (ideally 4) steps: megacore + pipelining


def _largest_divisor_at_most(n: int, cap: int) -> int:
    cap = max(1, min(n, cap))
    for d in range(cap, 0, -1):
        if n % d == 0:
            return d
    return 1


def _sublane_multiple(dtype) -> int:
    # f32 tiles at (8,128); packed dtypes at (16,128)/(32,128).
    return max(8, 32 // jnp.dtype(dtype).itemsize)


def _steps_cap(n: int) -> int:
    # Cap per-step folding along an axis of extent n so the grid keeps at
    # least min(n, _MIN_GRID_STEPS) steps along that axis.
    return max(1, n // min(n, _MIN_GRID_STEPS)) if n > 0 else 1


# ----------------------------- MaxPool2d -----------------------------------
def _maxpool_kernel(x_ref, o_ref, *, pool):
    # x_ref: (Cb, Rb*pool, W)    W on the lane dim
    # o_ref: (Cb, Rb,      W//pool)
    cb, hb, w = x_ref.shape
    rb = hb // pool
    wo = w // pool
    x = x_ref[...]                                  # single contiguous load
    # Sublane (H) pool reduce first: the intermediate is pool-x smaller before
    # the lane (W) split, so the lane relayout moves pool-x less data.
    m = jnp.max(x.reshape(cb, rb, pool, w), axis=2)        # (Cb, Rb, W)
    o_ref[...] = jnp.max(m.reshape(cb, rb, wo, pool), axis=3)


def maxpool2d(x_nchw, pool):
    n, c, h, w = x_nchw.shape
    ho, wo = h // pool, w // pool
    h_eff, w_eff = ho * pool, wo * pool
    if (h_eff, w_eff) != (h, w):
        # PyTorch MaxPool2d(kernel=stride=s) floors non-divisible spatial dims.
        x_nchw = x_nchw[:, :, :h_eff, :w_eff]

    nc = n * c
    isz = jnp.dtype(x_nchw.dtype).itemsize
    sub = _sublane_multiple(x_nchw.dtype)
    x2 = x_nchw.reshape(nc, h_eff, w_eff)           # free reshape, no transpose

    # Channel-plane folding: fill ~4 MiB blocks (HBM-roofline sized) but keep
    # at least a few grid steps so v7x's two TensorCores both get work and
    # the input DMA pipelines instead of being fully exposed.
    plane_bytes = h_eff * w_eff * isz
    budget_cap = max(1, _MAXPOOL_IN_BLOCK_BUDGET // max(plane_bytes, 1))
    cb = _largest_divisor_at_most(nc, min(budget_cap, _steps_cap(nc)))

    rb = ho
    if cb == 1 and plane_bytes > _MAXPOOL_IN_BLOCK_BUDGET:
        # Row-split fallback for very large planes.  Candidates keep BOTH the
        # input block's sublane extent (rb*pool) and the output block's (rb)
        # legal: a multiple of the dtype sublane tile, or the full extent.
        cands = [d for d in range(1, ho + 1)
                 if ho % d == 0 and (d == ho or d % sub == 0)]
        fitting = [d for d in cands
                   if d * pool * w_eff * isz <= _MAXPOOL_IN_BLOCK_BUDGET]
        rb = max(fitting) if fitting else min(cands)

    out = pl.pallas_call(
        functools.partial(_maxpool_kernel, pool=pool),
        out_shape=jax.ShapeDtypeStruct((nc, ho, wo), x_nchw.dtype),
        grid=(nc // cb, ho // rb),
        in_specs=[pl.BlockSpec((cb, rb * pool, w_eff), lambda i, j: (i, j, 0))],
        out_specs=pl.BlockSpec((cb, rb, wo), lambda i, j: (i, j, 0)),
        compiler_params=pltpu.CompilerParams(
            dimension_semantics=("parallel", "parallel"),
            vmem_limit_bytes=_VMEM_LIMIT_BYTES),
    )(x2)
    return out.reshape(n, c, ho, wo)


# ----------------------- UpsamplingBilinear2d -------------------------------
def _interp_matrix(n_in, n_out, dtype=jnp.float32):
    """align_corners=True bilinear interpolation matrix, shape (n_out, n_in)."""
    if n_out == 1:
        src = jnp.zeros((1,), jnp.float32)
    else:
        src = jnp.arange(n_out, dtype=jnp.float32) * (
            float(n_in - 1) / float(n_out - 1))
    i0 = jnp.clip(jnp.floor(src).astype(jnp.int32), 0, n_in - 1)
    i1 = jnp.clip(i0 + 1, 0, n_in - 1)
    frac = src - i0.astype(jnp.float32)
    cols = jnp.arange(n_in, dtype=jnp.int32)
    m = ((cols[None, :] == i0[:, None]).astype(jnp.float32) * (1.0 - frac)[:, None]
         + (cols[None, :] == i1[:, None]).astype(jnp.float32) * frac[:, None])
    return m.astype(dtype)


def _bilinear_kernel(mh_t_ref, mw_t_ref, x_ref, o_ref):
    # mh_t_ref: (H, HO)   mw_t_ref: (W, WO)
    # x_ref:    (Cb, H, W)         o_ref: (Cb, HO, WO)
    cb, h, w = x_ref.shape
    ho = mh_t_ref.shape[1]
    wo = mw_t_ref.shape[1]
    mat_dtype = mh_t_ref.dtype

    # H interpolation first, W last: the two transposes hit the two smallest
    # tensors and the second matmul result is already (Cb*HO, WO) row-major,
    # so there is no final output-sized transpose.  Cast BEFORE each transpose
    # to halve the relayout/copy traffic for bf16 operands.
    x = x_ref[...].astype(mat_dtype)                           # (Cb, H, W)
    xt = jnp.swapaxes(x, 1, 2)                                 # (Cb, W, H)
    t = jnp.dot(xt.reshape(cb * w, h), mh_t_ref[...],
                preferred_element_type=jnp.float32)            # (Cb*W, HO)
    t = t.reshape(cb, w, ho).astype(mat_dtype)                 # cast pre-transpose
    t = jnp.swapaxes(t, 1, 2)                                  # (Cb, HO, W)
    y = jnp.dot(t.reshape(cb * ho, w), mw_t_ref[...],
                preferred_element_type=jnp.float32)            # (Cb*HO, WO)
    o_ref[...] = y.reshape(cb, ho, wo).astype(o_ref.dtype)


def upsample_bilinear(x_nchw, factor):
    n, c, h, w = x_nchw.shape
    ho, wo = h * factor, w * factor
    nc = n * c
    isz = jnp.dtype(x_nchw.dtype).itemsize

    # bf16 inputs keep bf16 MXU operands (f32 accumulation); otherwise f32.
    # NOTE: bf16-quantized weights drift slightly from PyTorch's f32 weights.
    mat_dtype = jnp.bfloat16 if x_nchw.dtype == jnp.bfloat16 else jnp.float32
    msz = jnp.dtype(mat_dtype).itemsize
    mh_t = _interp_matrix(h, ho, mat_dtype).T      # (H, HO)
    mw_t = _interp_matrix(w, wo, mat_dtype).T      # (W, WO)

    # Per-channel VMEM footprint: double-buffered in/out blocks plus the
    # kernel temporaries actually materialized (cast/transposed input, f32
    # matmul results, cast copies).  Interp matrices counted separately.
    per_ch = (2 * h * w * isz              # input block (double-buffered)
              + 2 * ho * wo * isz          # output block (double-buffered)
              + 2 * h * w * msz            # cast + transposed input copies
              + w * ho * (4 + 2 * msz)     # f32 H-interp result + cast + transpose
              + ho * wo * (4 + isz))       # f32 W-interp result + output cast
    fixed = 2 * (h * ho + w * wo) * msz    # interp matrices (double-buffered)
    budget_cap = max(1, (_BILINEAR_VMEM_BUDGET - fixed) // max(per_ch, 1))
    cb = _largest_divisor_at_most(nc, min(budget_cap, _steps_cap(nc)))

    x2 = x_nchw.reshape(nc, h, w)                  # free reshape
    out = pl.pallas_call(
        _bilinear_kernel,
        out_shape=jax.ShapeDtypeStruct((nc, ho, wo), x_nchw.dtype),
        grid=(nc // cb,),
        in_specs=[
            pl.BlockSpec((h, ho), lambda i: (0, 0)),
            pl.BlockSpec((w, wo), lambda i: (0, 0)),
            pl.BlockSpec((cb, h, w), lambda i: (i, 0, 0)),
        ],
        out_specs=pl.BlockSpec((cb, ho, wo), lambda i: (i, 0, 0)),
        compiler_params=pltpu.CompilerParams(
            dimension_semantics=("parallel",),
            vmem_limit_bytes=_VMEM_LIMIT_BYTES),
    )(mh_t, mw_t, x2)
    return out.reshape(n, c, ho, wo)


# --------------------------- Module wrapper ---------------------------------
class ReshapeFeatures:
    """JAX/Pallas port of first_breaks unet3plus.ReshapeFeatures (no params)."""

    def __init__(self, scale_factor: int):
        self.scale_factor = int(scale_factor)

    def __call__(self, x):  # x: NCHW
        if self.scale_factor > 0:
            return maxpool2d(x, self.scale_factor)
        elif self.scale_factor < 0:
            return upsample_bilinear(x, abs(self.scale_factor))
        else:
            # nn.Identity(): no kernel, no HBM copy.
            return x


if __name__ == "__main__":
    key = jax.random.PRNGKey(0)
    x = jax.random.normal(key, (2, 4, 16, 16), dtype=jnp.float32)

    # scale_factor > 0  -> MaxPool2d(kernel_size=2)
    y_pool = ReshapeFeatures(2)(x)
    ref_pool = jnp.max(x.reshape(2, 4, 8, 2, 8, 2), axis=(3, 5))

    # scale_factor < 0  -> UpsamplingBilinear2d(scale_factor=2, align_corners=True)
    y_up = ReshapeFeatures(-2)(x)
    mh = _interp_matrix(16, 32, jnp.float32)
    mw = _interp_matrix(16, 32, jnp.float32)
    ref_up = jnp.einsum("oh,nchw,pw->ncop", mh, x, mw)

    # scale_factor == 0 -> Identity
    y_id = ReshapeFeatures(0)(x)

    jax.block_until_ready((y_pool, y_up, y_id))

    assert y_pool.shape == (2, 4, 8, 8) and y_pool.dtype == x.dtype
    assert y_up.shape == (2, 4, 32, 32) and y_up.dtype == x.dtype
    assert y_id.shape == x.shape
    assert jnp.allclose(y_pool, ref_pool)
    assert jnp.allclose(y_up, ref_up, atol=1e-4)
    assert jnp.allclose(y_id, x)
    print("KERNEL_OK")
</pallas_src>

<mosaic_0001>
module attributes {stable_mosaic.version = 11 : i64} {
  func.func @_maxpool_kernel(%arg0: i32, %arg1: i32, %arg2: memref<2x16x16xf32, #tpu.memory_space<vmem>>, %arg3: memref<2x8x8xf32, #tpu.memory_space<vmem>>) attributes {dimension_semantics = [#tpu.dimension_semantics<parallel>, #tpu.dimension_semantics<parallel>], iteration_bounds = array<i64: 4, 1>, scalar_prefetch = 0 : i64, scratch_operands = 0 : i64, tpu.core_type = #tpu.core_type<tc>, window_params = [{transform_indices = @transform_0, window_bounds = array<i64: 2, 16, 16>}, {transform_indices = @transform_1, window_bounds = array<i64: 2, 8, 8>}]} {
    %c0 = arith.constant 0 : index
    %c0_0 = arith.constant 0 : index
    %c0_1 = arith.constant 0 : index
    %0 = vector.load %arg2[%c0, %c0_0, %c0_1] : memref<2x16x16xf32, #tpu.memory_space<vmem>>, vector<2x16x16xf32>
    %1 = vector.shape_cast %0 : vector<2x16x16xf32> to vector<2x8x2x16xf32>
    %cst = arith.constant dense<0xFF800000> : vector<2x8x16xf32>
    %2 = vector.multi_reduction <maximumf>, %1, %cst [2] : vector<2x8x2x16xf32> to vector<2x8x16xf32>
    %3 = vector.shape_cast %2 : vector<2x8x16xf32> to vector<2x8x8x2xf32>
    %cst_2 = arith.constant dense<0xFF800000> : vector<2x8x8xf32>
    %4 = vector.multi_reduction <maximumf>, %3, %cst_2 [3] : vector<2x8x8x2xf32> to vector<2x8x8xf32>
    %c0_3 = arith.constant 0 : index
    %c0_4 = arith.constant 0 : index
    %c0_5 = arith.constant 0 : index
    %5 = vector.load %arg3[%c0_3, %c0_4, %c0_5] : memref<2x8x8xf32, #tpu.memory_space<vmem>>, vector<2x8x8xf32>
    tpu.vector_store %arg3[%c0_3, %c0_4, %c0_5], %4 {strides = array<i32>} : memref<2x8x8xf32, #tpu.memory_space<vmem>>, vector<2x8x8xf32>,
    return
  }
  func.func @transform_0(%arg0: i32, %arg1: i32) -> (i32, i32, i32) {
    %c0_i32 = arith.constant 0 : i32
    %c0_i32_0 = arith.constant 0 : i32
    return %arg0, %arg1, %c0_i32 : i32, i32, i32
  }
  func.func @transform_1(%arg0: i32, %arg1: i32) -> (i32, i32, i32) {
    %c0_i32 = arith.constant 0 : i32
    %c0_i32_0 = arith.constant 0 : i32
    return %arg0, %arg1, %c0_i32 : i32, i32, i32
  }
}

</mosaic_0001>

<llo_original>
// kernel: tpu_custom_call.1
$region0: #{tpu_custom_call.1}
  #allocation0 [shape = 'u32[]', space=smem, size = 0x4, offset = 0x4, fixed_abs, tag = 'smem constant byte address 0x4 - core index']
  #allocation1 [shape = 'u32[144,128]{1,0:T(1,128)}', space=vmem, size = 0x12000, scoped, tag = 'internal scratch']
  %s0 = inlined_call_operand.hbm [shape: f32[8,16,16], index: 0, kind: input, shape index: {}]
  %s1 = inlined_call_operand.hbm [shape: f32[8,8,8], index: 1, kind: output, shape index: {}]
  %s2 = sld [smem:[#allocation0]]
  $region41: #{tpu_custom_call.1} parent=0
    _
  %s4 = ssub.s32 1, %s2
  %s5 = scalar_select 0, %s4, %s2
  $region1: #{tpu_custom_call.1} parent=0
    #allocation2 [shape = 'u8[32768]{0}', space=vmem, size = 0x8000, scoped, tag = 'input window, operand 0']
    #allocation3 [shape = 's32[2]{0}', space=sflag, size = 0x8, scoped, tag = 'scoped memory for tpu_custom_call.1']
    #allocation4 [shape = 's32[2]{0}', space=sflag, size = 0x8, scoped, tag = 'scoped memory for tpu_custom_call.1']
    #allocation5 [shape = 'u8[16384]{0}', space=vmem, size = 0x4000, scoped, tag = 'output window, operand 0']
    %6 = vsyncpa [#allocation3], 0
    %s7 = scalar_lea.sflag [#allocation3], 1
    %8 = vsyncpa %s7, 0
    %9 = vsyncpa [#allocation4], 0
    %s10 = scalar_lea.sflag [#allocation4], 1
    %11 = vsyncpa %s10, 0
    loop: start=0, step=1, limit=6
    $region2: #{tpu_custom_call.1} parent=1 // loop_pre_header
      _
    $region3: #{tpu_custom_call.1} parent=1 // loop_header
      %s13 = sphi 0, %s17
      %p14 = scmp.ge.s32.totalorder %s13, 6
      %s20 = sphi 0, %s32
      %s21 = sphi 0, %s28
      %s22 = sphi 0, %s20
      %s23 = sphi 0, %s21
      %s24 = sphi 0, %s22
      %s25 = sphi 0, %s23
      %s37 = sphi 0, %s39
      %s40 = sphi 0, %s37
      %s41 = sphi 0, %s40
      %s57 = sphi 0, %s41
      %s65 = sphi 0, %s67
      %s68 = sphi 0, %s65
      %s69 = sphi 0, %s68
      %s85 = sphi 0, %s69
    $region4: #{tpu_custom_call.1} parent=1 // loop_header_branch
      %16 = sbr.rel (%p14) target = $region8
    $region5: #{tpu_custom_call.1} parent=1 // loop_body
      %s18 = ssub.s32 %s13, 1
      %s19 = ssub.s32 %s13, 2
      %s26 = sadd.s32 1, %s21
      %p27 = scmp.ge.s32.totalorder %s26, 1
      %s28 = scalar_select %p27, 0, %s26
      %s29 = sadd.s32 1, %s20
      %s30 = scalar_select %p27, %s29, %s20
      %p31 = scmp.ge.s32.totalorder %s30, 4
      %s32 = scalar_select %p31, 0, %s30
      %s33 = ssub.s32 %s20, %s32
      %s34 = ssub.s32 %s21, %s28
      %s35 = sor.u32 %s33, %s34
      %p36 = scmp.eq.s32.totalorder %s35, 0
      %s38 = sadd.s32 %s37, 1
      %s39 = scalar_select %p36, %s37, %s38
      %p42 = pneg %p36
      %p43 = scmp.eq.s32.totalorder %s13, 3
      %p44 = por %p42, %p43
      %p45 = scmp.ne.s32.totalorder %s37, %s40
      %p46 = scmp.eq.s32.totalorder %s13, 0
      %p47 = por %p45, %p46
      %p48 = scmp.ne.s32.totalorder %s37, %s40
      %p49 = scmp.eq.s32.totalorder %s18, 3
      %p50 = por %p48, %p49
      %p51 = scmp.ne.s32.totalorder %s40, %s41
      %p52 = scmp.eq.s32.totalorder %s18, 0
      %p53 = por %p51, %p52
      %p54 = scmp.ne.s32.totalorder %s40, %s41
      %p55 = scmp.eq.s32.totalorder %s19, 3
      %p56 = por %p54, %p55
      %p58 = scmp.ne.s32.totalorder %s41, %s57
      %p59 = scmp.eq.s32.totalorder %s19, 0
      %p60 = por %p58, %p59
      %s61 = ssub.s32 %s20, %s32
      %s62 = ssub.s32 %s21, %s28
      %s63 = sor.u32 %s61, %s62
      %p64 = scmp.eq.s32.totalorder %s63, 0
      %s66 = sadd.s32 %s65, 1
      %s67 = scalar_select %p64, %s65, %s66
      %p70 = pneg %p64
      %p71 = scmp.eq.s32.totalorder %s13, 3
      %p72 = por %p70, %p71
      %p73 = scmp.ne.s32.totalorder %s65, %s68
      %p74 = scmp.eq.s32.totalorder %s13, 0
      %p75 = por %p73, %p74
      %p76 = scmp.ne.s32.totalorder %s65, %s68
      %p77 = scmp.eq.s32.totalorder %s18, 3
      %p78 = por %p76, %p77
      %p79 = scmp.ne.s32.totalorder %s68, %s69
      %p80 = scmp.eq.s32.totalorder %s18, 0
      %p81 = por %p79, %p80
      %p82 = scmp.ne.s32.totalorder %s68, %s69
      %p83 = scmp.eq.s32.totalorder %s19, 3
      %p84 = por %p82, %p83
      %p86 = scmp.ne.s32.totalorder %s69, %s85
      %p87 = scmp.eq.s32.totalorder %s19, 0
      %p88 = por %p86, %p87
      %p89 = scmp.le.s32.totalorder 1, %s13
      %p90 = scmp.lt.s32.totalorder %s13, 5
      %p91 = pnand %p89, %p90
      %p92 = pneg %p91
      // Predicated region
      $region9: #{tpu_custom_call.1} parent=5 // pred_check
        _
      $region10: #{tpu_custom_call.1} parent=5 // pred_check_branch
        %94 = sbr.rel (%p91) target = $region12
      $region11: #{tpu_custom_call.1} parent=5 // pred_region
        %s95 = ssub.s32 %s13, 1
      $region12: #{tpu_custom_call.1} parent=5 // pred_fallthru
        _
      %p96 = scmp.lt.s32.totalorder %s13, 4
      // Predicated region
      $region13: #{tpu_custom_call.1} parent=5 // pred_check
        %p97 = pneg %p96
      $region14: #{tpu_custom_call.1} parent=5 // pred_check_branch
        %99 = sbr.rel (%p97) target = $region16
      $region15: #{tpu_custom_call.1} parent=5 // pred_region
        // Predicated region
        $region17: #{tpu_custom_call.1} parent=15 // pred_check
          %p100 = pneg %p47
        $region18: #{tpu_custom_call.1} parent=15 // pred_check_branch
          %102 = sbr.rel (%p100) target = $region20
        $region19: #{tpu_custom_call.1} parent=15 // pred_region
          %s103 = sand.u32 %s37, 1
          %s104 = scalar_lea.sflag [#allocation3], %s103
          %s105 = sand.u32 %s37, 1
          %s106 = smul.addr %s105, 32
          %s107 = scalar_lea.vmem [#allocation2], %s106
          %s108 = smul.u32 2, %s20
          %s109 = smul.u32 2, %s21
          %s111 = ssub.s32 512, 512
          %112 = vsyncadd %s104, %s111
          %s113 = smul.addr %s108, 2
          %s114 = sadd.s32 %s109, %s113
          %s115 = smul.addr %s114, 128
          %s116 = scalar_lea.hbm %s0, %s115
          %s117 = sshll.u32 %s107, 4
          %s118 = int_to_ptr.vmem [resolvable:$true] %s117
          %123 = dma.hbm_to_vmem [thread:$0]  %s116, 512, %s118, %s104, 128, 128, 8
        $region20: #{tpu_custom_call.1} parent=15 // pred_fallthru
          _
      $region16: #{tpu_custom_call.1} parent=5 // pred_fallthru
        _
      %p124 = scmp.le.s32.totalorder 1, %s13
      %p125 = scmp.lt.s32.totalorder %s13, 5
      %p126 = pnand %p124, %p125
      %p127 = pneg %p126
      // Predicated region
      $region21: #{tpu_custom_call.1} parent=5 // pred_check
        _
      $region22: #{tpu_custom_call.1} parent=5 // pred_check_branch
        %129 = sbr.rel (%p126) target = $region24
      $region23: #{tpu_custom_call.1} parent=5 // pred_region
        %s130 = ssub.s32 %s13, 1
        %s131 = sand.u32 %s40, 1
        %s132 = scalar_lea.sflag [#allocation3], %s131
        %s133 = sand.u32 %s40, 1
        %s134 = smul.addr %s133, 32
        %s135 = scalar_lea.vmem [#allocation2], %s134
        // Predicated region
        $region25: #{tpu_custom_call.1} parent=23 // pred_check
          %p136 = pneg %p53
        $region26: #{tpu_custom_call.1} parent=23 // pred_check_branch
          %138 = sbr.rel (%p136) target = $region28
        $region27: #{tpu_custom_call.1} parent=23 // pred_region
          %139 = dma.done %s132, 512
        $region28: #{tpu_custom_call.1} parent=23 // pred_fallthru
          _
        %s140 = sand.u32 %s40, 1
        %s141 = scalar_lea.sflag [#allocation3], %s140
        %s142 = sand.u32 %s40, 1
        %s143 = smul.addr %s142, 32
        %s144 = scalar_lea.vmem [#allocation2], %s143
        %p145 = pneg %p53
        %p146 = pneg %p50
        %p147 = pneg %p81
        %p148 = pneg %p78
        %s149 = sand.u32 %s68, 1
        %s150 = scalar_lea.sflag [#allocation4], %s149
        %s151 = sand.u32 %s68, 1
        %s152 = smul.addr %s151, 16
        %s153 = scalar_lea.vmem [#allocation5], %s152
        %s154 = smul.u32 2, %s22
        %s155 = smul.u32 2, %s23
        %s156 = smul.u32 2, %s22
        %v157 = vld [vmem:[%s135] sm:$0xff]
        %v158 = vld [vmem:[%s135 + $0x8] sm:$0xff]
        %v159 = vld [vmem:[%s135 + $0x10] sm:$0xff]
        %v160 = vld [vmem:[%s135 + $0x18] sm:$0xff]
        %v165 = vcombine.high %v157, %v157
        %v167 = vunpack.c.l.s4 1983009808
        %v168 = vunpack.c.0.s8 %v167
        %v169 = vlaneseq
        %v170 = vshrl.u32 %v169, 7
        %v171 = vsub.s32 %v168, %v170
        %v172 = vrot.slane %v157, %v171
        %v174 = vunpack.c.l.s4 1983009808
        %v175 = vunpack.c.0.s8 %v174
        %v176 = vlaneseq
        %v177 = vshrl.u32 %v176, 7
        %v178 = vsub.s32 %v175, %v177
        %v179 = vrot.slane %v165, %v178
        %v180 = vcombine.high %v172, %v172
        %v181 = vcombine.high %v179, %v179
        %v182 = vcombine.high %v158, %v158
        %v184 = vunpack.c.l.s4 1983009808
        %v185 = vunpack.c.0.s8 %v184
        %v186 = vlaneseq
        %v187 = vshrl.u32 %v186, 7
        %v188 = vsub.s32 %v185, %v187
        %v189 = vrot.slane %v158, %v188
        %v191 = vunpack.c.l.s4 1983009808
        %v192 = vunpack.c.0.s8 %v191
        %v193 = vlaneseq
        %v194 = vshrl.u32 %v193, 7
        %v195 = vsub.s32 %v192, %v194
        %v196 = vrot.slane %v182, %v195
        %v197 = vcombine.high %v189, %v189
        %v198 = vcombine.high %v196, %v196
        %v199 = vcombine.high %v159, %v159
        %v201 = vunpack.c.l.s4 1983009808
        %v202 = vunpack.c.0.s8 %v201
        %v203 = vlaneseq
        %v204 = vshrl.u32 %v203, 7
        %v205 = vsub.s32 %v202, %v204
        %v206 = vrot.slane %v159, %v205
        %v208 = vunpack.c.l.s4 1983009808
        %v209 = vunpack.c.0.s8 %v208
        %v210 = vlaneseq
        %v211 = vshrl.u32 %v210, 7
        %v212 = vsub.s32 %v209, %v211
        %v213 = vrot.slane %v199, %v212
        %v214 = vcombine.high %v206, %v206
        %v215 = vcombine.high %v213, %v213
        %v216 = vcombine.high %v160, %v160
        %v218 = vunpack.c.l.s4 1983009808
        %v219 = vunpack.c.0.s8 %v218
        %v220 = vlaneseq
        %v221 = vshrl.u32 %v220, 7
        %v222 = vsub.s32 %v219, %v221
        %v223 = vrot.slane %v160, %v222
        %v225 = vunpack.c.l.s4 1983009808
        %v226 = vunpack.c.0.s8 %v225
        %v227 = vlaneseq
        %v228 = vshrl.u32 %v227, 7
        %v229 = vsub.s32 %v226, %v228
        %v230 = vrot.slane %v216, %v229
        %v231 = vcombine.high %v223, %v223
        %v232 = vcombine.high %v230, %v230
        %vm249 = vcmask 123904
        %v250 = vsel %vm249, %v172, -inf
        %v251 = vrot.slane %v250, 4
        %v252 = vmax.f32 %v250, %v251
        %v253 = vrot.slane %v252, 2
        %v254 = vmax.f32 %v252, %v253
        %v255 = vrot.slane %v254, 1
        %v256 = vmax.f32 %v254, %v255
        %v257 = vsel %vm249, %v180, -inf
        %v258 = vrot.slane %v257, 4
        %v259 = vmax.f32 %v257, %v258
        %v260 = vrot.slane %v259, 2
        %v261 = vmax.f32 %v259, %v260
        %v262 = vrot.slane %v261, 1
        %v263 = vmax.f32 %v261, %v262
        %v264 = vsel %vm249, %v179, -inf
        %v265 = vrot.slane %v264, 4
        %v266 = vmax.f32 %v264, %v265
        %v267 = vrot.slane %v266, 2
        %v268 = vmax.f32 %v266, %v267
        %v269 = vrot.slane %v268, 1
        %v270 = vmax.f32 %v268, %v269
        %v271 = vsel %vm249, %v181, -inf
        %v272 = vrot.slane %v271, 4
        %v273 = vmax.f32 %v271, %v272
        %v274 = vrot.slane %v273, 2
        %v275 = vmax.f32 %v273, %v274
        %v276 = vrot.slane %v275, 1
        %v277 = vmax.f32 %v275, %v276
        %v278 = vsel %vm249, %v189, -inf
        %v279 = vrot.slane %v278, 4
        %v280 = vmax.f32 %v278, %v279
        %v281 = vrot.slane %v280, 2
        %v282 = vmax.f32 %v280, %v281
        %v283 = vrot.slane %v282, 1
        %v284 = vmax.f32 %v282, %v283
        %v285 = vsel %vm249, %v197, -inf
        %v286 = vrot.slane %v285, 4
        %v287 = vmax.f32 %v285, %v286
        %v288 = vrot.slane %v287, 2
        %v289 = vmax.f32 %v287, %v288
        %v290 = vrot.slane %v289, 1
        %v291 = vmax.f32 %v289, %v290
        %v292 = vsel %vm249, %v196, -inf
        %v293 = vrot.slane %v292, 4
        %v294 = vmax.f32 %v292, %v293
        %v295 = vrot.slane %v294, 2
        %v296 = vmax.f32 %v294, %v295
        %v297 = vrot.slane %v296, 1
        %v298 = vmax.f32 %v296, %v297
        %v299 = vsel %vm249, %v198, -inf
        %v300 = vrot.slane %v299, 4
        %v301 = vmax.f32 %v299, %v300
        %v302 = vrot.slane %v301, 2
        %v303 = vmax.f32 %v301, %v302
        %v304 = vrot.slane %v303, 1
        %v305 = vmax.f32 %v303, %v304
        %v306 = vsel %vm249, %v206, -inf
        %v307 = vrot.slane %v306, 4
        %v308 = vmax.f32 %v306, %v307
        %v309 = vrot.slane %v308, 2
        %v310 = vmax.f32 %v308, %v309
        %v311 = vrot.slane %v310, 1
        %v312 = vmax.f32 %v310, %v311
        %v313 = vsel %vm249, %v214, -inf
        %v314 = vrot.slane %v313, 4
        %v315 = vmax.f32 %v313, %v314
        %v316 = vrot.slane %v315, 2
        %v317 = vmax.f32 %v315, %v316
        %v318 = vrot.slane %v317, 1
        %v319 = vmax.f32 %v317, %v318
        %v320 = vsel %vm249, %v213, -inf
        %v321 = vrot.slane %v320, 4
        %v322 = vmax.f32 %v320, %v321
        %v323 = vrot.slane %v322, 2
        %v324 = vmax.f32 %v322, %v323
        %v325 = vrot.slane %v324, 1
        %v326 = vmax.f32 %v324, %v325
        %v327 = vsel %vm249, %v215, -inf
        %v328 = vrot.slane %v327, 4
        %v329 = vmax.f32 %v327, %v328
        %v330 = vrot.slane %v329, 2
        %v331 = vmax.f32 %v329, %v330
        %v332 = vrot.slane %v331, 1
        %v333 = vmax.f32 %v331, %v332
        %v334 = vsel %vm249, %v223, -inf
        %v335 = vrot.slane %v334, 4
        %v336 = vmax.f32 %v334, %v335
        %v337 = vrot.slane %v336, 2
        %v338 = vmax.f32 %v336, %v337
        %v339 = vrot.slane %v338, 1
        %v340 = vmax.f32 %v338, %v339
        %v341 = vsel %vm249, %v231, -inf
        %v342 = vrot.slane %v341, 4
        %v343 = vmax.f32 %v341, %v342
        %v344 = vrot.slane %v343, 2
        %v345 = vmax.f32 %v343, %v344
        %v346 = vrot.slane %v345, 1
        %v347 = vmax.f32 %v345, %v346
        %v348 = vsel %vm249, %v230, -inf
        %v349 = vrot.slane %v348, 4
        %v350 = vmax.f32 %v348, %v349
        %v351 = vrot.slane %v350, 2
        %v352 = vmax.f32 %v350, %v351
        %v353 = vrot.slane %v352, 1
        %v354 = vmax.f32 %v352, %v353
        %v355 = vsel %vm249, %v232, -inf
        %v356 = vrot.slane %v355, 4
        %v357 = vmax.f32 %v355, %v356
        %v358 = vrot.slane %v357, 2
        %v359 = vmax.f32 %v357, %v358
        %v360 = vrot.slane %v359, 1
        %v361 = vmax.f32 %v359, %v360
        %378 = vrot.lane.b32.xlu0 %v256, 126
        %v379 = vpop.permute.xlu0 %378
        %380 = vrot.lane.b32.xlu0 %v263, 126
        %v381 = vpop.permute.xlu0 %380
        %382 = vrot.lane.b32.xlu0 %v270, 126
        %v383 = vpop.permute.xlu0 %382
        %384 = vrot.lane.b32.xlu0 %v277, 126
        %v385 = vpop.permute.xlu0 %384
        %386 = vrot.lane.b32.xlu0 %v284, 126
        %v387 = vpop.permute.xlu0 %386
        %388 = vrot.lane.b32.xlu0 %v291, 126
        %v389 = vpop.permute.xlu0 %388
        %390 = vrot.lane.b32.xlu0 %v298, 126
        %v391 = vpop.permute.xlu0 %390
        %392 = vrot.lane.b32.xlu0 %v305, 126
        %v393 = vpop.permute.xlu0 %392
        %394 = vrot.lane.b32.xlu0 %v312, 126
        %v395 = vpop.permute.xlu0 %394
        %396 = vrot.lane.b32.xlu0 %v319, 126
        %v397 = vpop.permute.xlu0 %396
        %398 = vrot.lane.b32.xlu0 %v326, 126
        %v399 = vpop.permute.xlu0 %398
        %400 = vrot.lane.b32.xlu0 %v333, 126
        %v401 = vpop.permute.xlu0 %400
        %402 = vrot.lane.b32.xlu0 %v340, 126
        %v403 = vpop.permute.xlu0 %402
        %404 = vrot.lane.b32.xlu0 %v347, 126
        %v405 = vpop.permute.xlu0 %404
        %406 = vrot.lane.b32.xlu0 %v354, 126
        %v407 = vpop.permute.xlu0 %406
        %408 = vrot.lane.b32.xlu0 %v361, 126
        %v409 = vpop.permute.xlu0 %408
        %410 = vrot.lane.b32.xlu0 %v256, 124
        %v411 = vpop.permute.xlu0 %410
        %412 = vrot.lane.b32.xlu0 %v263, 124
        %v413 = vpop.permute.xlu0 %412
        %414 = vrot.lane.b32.xlu0 %v270, 124
        %v415 = vpop.permute.xlu0 %414
        %416 = vrot.lane.b32.xlu0 %v277, 124
        %v417 = vpop.permute.xlu0 %416
        %418 = vrot.lane.b32.xlu0 %v284, 124
        %v419 = vpop.permute.xlu0 %418
        %420 = vrot.lane.b32.xlu0 %v291, 124
        %v421 = vpop.permute.xlu0 %420
        %422 = vrot.lane.b32.xlu0 %v298, 124
        %v423 = vpop.permute.xlu0 %422
        %424 = vrot.lane.b32.xlu0 %v305, 124
        %v425 = vpop.permute.xlu0 %424
        %426 = vrot.lane.b32.xlu0 %v312, 124
        %v427 = vpop.permute.xlu0 %426
        %428 = vrot.lane.b32.xlu0 %v319, 124
        %v429 = vpop.permute.xlu0 %428
        %430 = vrot.lane.b32.xlu0 %v326, 124
        %v431 = vpop.permute.xlu0 %430
        %432 = vrot.lane.b32.xlu0 %v333, 124
        %v433 = vpop.permute.xlu0 %432
        %434 = vrot.lane.b32.xlu0 %v340, 124
        %v435 = vpop.permute.xlu0 %434
        %436 = vrot.lane.b32.xlu0 %v347, 124
        %v437 = vpop.permute.xlu0 %436
        %438 = vrot.lane.b32.xlu0 %v354, 124
        %v439 = vpop.permute.xlu0 %438
        %440 = vrot.lane.b32.xlu0 %v361, 124
        %v441 = vpop.permute.xlu0 %440
        %442 = vrot.lane.b32.xlu0 %v256, 122
        %v443 = vpop.permute.xlu0 %442
        %444 = vrot.lane.b32.xlu0 %v263, 122
        %v445 = vpop.permute.xlu0 %444
        %446 = vrot.lane.b32.xlu0 %v270, 122
        %v447 = vpop.permute.xlu0 %446
        %448 = vrot.lane.b32.xlu0 %v277, 122
        %v449 = vpop.permute.xlu0 %448
        %450 = vrot.lane.b32.xlu0 %v284, 122
        %v451 = vpop.permute.xlu0 %450
        %452 = vrot.lane.b32.xlu0 %v291, 122
        %v453 = vpop.permute.xlu0 %452
        %454 = vrot.lane.b32.xlu0 %v298, 122
        %v455 = vpop.permute.xlu0 %454
        %456 = vrot.lane.b32.xlu0 %v305, 122
        %v457 = vpop.permute.xlu0 %456
        %458 = vrot.lane.b32.xlu0 %v312, 122
        %v459 = vpop.permute.xlu0 %458
        %460 = vrot.lane.b32.xlu0 %v319, 122
        %v461 = vpop.permute.xlu0 %460
        %462 = vrot.lane.b32.xlu0 %v326, 122
        %v463 = vpop.permute.xlu0 %462
        %464 = vrot.lane.b32.xlu0 %v333, 122
        %v465 = vpop.permute.xlu0 %464
        %466 = vrot.lane.b32.xlu0 %v340, 122
        %v467 = vpop.permute.xlu0 %466
        %468 = vrot.lane.b32.xlu0 %v347, 122
        %v469 = vpop.permute.xlu0 %468
        %470 = vrot.lane.b32.xlu0 %v354, 122
        %v471 = vpop.permute.xlu0 %470
        %472 = vrot.lane.b32.xlu0 %v361, 122
        %v473 = vpop.permute.xlu0 %472
        %474 = vrot.lane.b32.xlu0 %v256, 120
        %v475 = vpop.permute.xlu0 %474
        %476 = vrot.lane.b32.xlu0 %v263, 120
        %v477 = vpop.permute.xlu0 %476
        %478 = vrot.lane.b32.xlu0 %v270, 120
        %v479 = vpop.permute.xlu0 %478
        %480 = vrot.lane.b32.xlu0 %v277, 120
        %v481 = vpop.permute.xlu0 %480
        %482 = vrot.lane.b32.xlu0 %v284, 120
        %v483 = vpop.permute.xlu0 %482
        %484 = vrot.lane.b32.xlu0 %v291, 120
        %v485 = vpop.permute.xlu0 %484
        %486 = vrot.lane.b32.xlu0 %v298, 120
        %v487 = vpop.permute.xlu0 %486
        %488 = vrot.lane.b32.xlu0 %v305, 120
        %v489 = vpop.permute.xlu0 %488
        %490 = vrot.lane.b32.xlu0 %v312, 120
        %v491 = vpop.permute.xlu0 %490
        %492 = vrot.lane.b32.xlu0 %v319, 120
        %v493 = vpop.permute.xlu0 %492
        %494 = vrot.lane.b32.xlu0 %v326, 120
        %v495 = vpop.permute.xlu0 %494
        %496 = vrot.lane.b32.xlu0 %v333, 120
        %v497 = vpop.permute.xlu0 %496
        %498 = vrot.lane.b32.xlu0 %v340, 120
        %v499 = vpop.permute.xlu0 %498
        %500 = vrot.lane.b32.xlu0 %v347, 120
        %v501 = vpop.permute.xlu0 %500
        %502 = vrot.lane.b32.xlu0 %v354, 120
        %v503 = vpop.permute.xlu0 %502
        %504 = vrot.lane.b32.xlu0 %v361, 120
        %v505 = vpop.permute.xlu0 %504
        %506 = vrot.lane.b32.xlu0 %v256, 118
        %v507 = vpop.permute.xlu0 %506
        %508 = vrot.lane.b32.xlu0 %v263, 118
        %v509 = vpop.permute.xlu0 %508
        %510 = vrot.lane.b32.xlu0 %v270, 118
        %v511 = vpop.permute.xlu0 %510
        %512 = vrot.lane.b32.xlu0 %v277, 118
        %v513 = vpop.permute.xlu0 %512
        %514 = vrot.lane.b32.xlu0 %v284, 118
        %v515 = vpop.permute.xlu0 %514
        %516 = vrot.lane.b32.xlu0 %v291, 118
        %v517 = vpop.permute.xlu0 %516
        %518 = vrot.lane.b32.xlu0 %v298, 118
        %v519 = vpop.permute.xlu0 %518
        %520 = vrot.lane.b32.xlu0 %v305, 118
        %v521 = vpop.permute.xlu0 %520
        %522 = vrot.lane.b32.xlu0 %v312, 118
        %v523 = vpop.permute.xlu0 %522
        %524 = vrot.lane.b32.xlu0 %v319, 118
        %v525 = vpop.permute.xlu0 %524
        %526 = vrot.lane.b32.xlu0 %v326, 118
        %v527 = vpop.permute.xlu0 %526
        %528 = vrot.lane.b32.xlu0 %v333, 118
        %v529 = vpop.permute.xlu0 %528
        %530 = vrot.lane.b32.xlu0 %v340, 118
        %v531 = vpop.permute.xlu0 %530
        %532 = vrot.lane.b32.xlu0 %v347, 118
        %v533 = vpop.permute.xlu0 %532
        %534 = vrot.lane.b32.xlu0 %v354, 118
        %v535 = vpop.permute.xlu0 %534
        %536 = vrot.lane.b32.xlu0 %v361, 118
        %v537 = vpop.permute.xlu0 %536
        %538 = vrot.lane.b32.xlu0 %v256, 116
        %v539 = vpop.permute.xlu0 %538
        %540 = vrot.lane.b32.xlu0 %v263, 116
        %v541 = vpop.permute.xlu0 %540
        %542 = vrot.lane.b32.xlu0 %v270, 116
        %v543 = vpop.permute.xlu0 %542
        %544 = vrot.lane.b32.xlu0 %v277, 116
        %v545 = vpop.permute.xlu0 %544
        %546 = vrot.lane.b32.xlu0 %v284, 116
        %v547 = vpop.permute.xlu0 %546
        %548 = vrot.lane.b32.xlu0 %v291, 116
        %v549 = vpop.permute.xlu0 %548
        %550 = vrot.lane.b32.xlu0 %v298, 116
        %v551 = vpop.permute.xlu0 %550
        %552 = vrot.lane.b32.xlu0 %v305, 116
        %v553 = vpop.permute.xlu0 %552
        %554 = vrot.lane.b32.xlu0 %v312, 116
        %v555 = vpop.permute.xlu0 %554
        %556 = vrot.lane.b32.xlu0 %v319, 116
        %v557 = vpop.permute.xlu0 %556
        %558 = vrot.lane.b32.xlu0 %v326, 116
        %v559 = vpop.permute.xlu0 %558
        %560 = vrot.lane.b32.xlu0 %v333, 116
        %v561 = vpop.permute.xlu0 %560
        %562 = vrot.lane.b32.xlu0 %v340, 116
        %v563 = vpop.permute.xlu0 %562
        %564 = vrot.lane.b32.xlu0 %v347, 116
        %v565 = vpop.permute.xlu0 %564
        %566 = vrot.lane.b32.xlu0 %v354, 116
        %v567 = vpop.permute.xlu0 %566
        %568 = vrot.lane.b32.xlu0 %v361, 116
        %v569 = vpop.permute.xlu0 %568
        %570 = vrot.lane.b32.xlu0 %v256, 114
        %v571 = vpop.permute.xlu0 %570
        %572 = vrot.lane.b32.xlu0 %v263, 114
        %v573 = vpop.permute.xlu0 %572
        %574 = vrot.lane.b32.xlu0 %v270, 114
        %v575 = vpop.permute.xlu0 %574
        %576 = vrot.lane.b32.xlu0 %v277, 114
        %v577 = vpop.permute.xlu0 %576
        %578 = vrot.lane.b32.xlu0 %v284, 114
        %v579 = vpop.permute.xlu0 %578
        %580 = vrot.lane.b32.xlu0 %v291, 114
        %v581 = vpop.permute.xlu0 %580
        %582 = vrot.lane.b32.xlu0 %v298, 114
        %v583 = vpop.permute.xlu0 %582
        %584 = vrot.lane.b32.xlu0 %v305, 114
        %v585 = vpop.permute.xlu0 %584
        %586 = vrot.lane.b32.xlu0 %v312, 114
        %v587 = vpop.permute.xlu0 %586
        %588 = vrot.lane.b32.xlu0 %v319, 114
        %v589 = vpop.permute.xlu0 %588
        %590 = vrot.lane.b32.xlu0 %v326, 114
        %v591 = vpop.permute.xlu0 %590
        %592 = vrot.lane.b32.xlu0 %v333, 114
        %v593 = vpop.permute.xlu0 %592
        %594 = vrot.lane.b32.xlu0 %v340, 114
        %v595 = vpop.permute.xlu0 %594
        %596 = vrot.lane.b32.xlu0 %v347, 114
        %v597 = vpop.permute.xlu0 %596
        %598 = vrot.lane.b32.xlu0 %v354, 114
        %v599 = vpop.permute.xlu0 %598
        %600 = vrot.lane.b32.xlu0 %v361, 114
        %v601 = vpop.permute.xlu0 %600
        %v602 = vrot.slane %v263, 7
        %vm603 = vcmask 1041409
        %v604 = vsel %vm603, %v602, %v256
        %v605 = vrot.slane %v270, 6
        %vm606 = vcmask 1042434
        %v607 = vsel %vm606, %v605, %v604
        %v608 = vrot.slane %v277, 5
        %vm609 = vcmask 1043459
        %v610 = vsel %vm609, %v608, %v607
        %v611 = vrot.slane %v284, 4
        %vm612 = vcmask 1044484
        %v613 = vsel %vm612, %v611, %v610
        %v614 = vrot.slane %v291, 3
        %vm615 = vcmask 1045509
        %v616 = vsel %vm615, %v614, %v613
        %v617 = vrot.slane %v298, 2
        %vm618 = vcmask 1046534
        %v619 = vsel %vm618, %v617, %v616
        %v620 = vrot.slane %v305, 1
        %vm621 = vcmask 1047559
        %v622 = vsel %vm621, %v620, %v619
        %v623 = vrot.slane %v381, 7
        %v624 = vsel %vm603, %v623, %v379
        %v625 = vrot.slane %v383, 6
        %v626 = vsel %vm606, %v625, %v624
        %v627 = vrot.slane %v385, 5
        %v628 = vsel %vm609, %v627, %v626
        %v629 = vrot.slane %v387, 4
        %v630 = vsel %vm612, %v629, %v628
        %v631 = vrot.slane %v389, 3
        %v632 = vsel %vm615, %v631, %v630
        %v633 = vrot.slane %v391, 2
        %v634 = vsel %vm618, %v633, %v632
        %v635 = vrot.slane %v393, 1
        %v636 = vsel %vm621, %v635, %v634
        %v637 = vrot.slane %v413, 7
        %v638 = vsel %vm603, %v637, %v411
        %v639 = vrot.slane %v415, 6
        %v640 = vsel %vm606, %v639, %v638
        %v641 = vrot.slane %v417, 5
        %v642 = vsel %vm609, %v641, %v640
        %v643 = vrot.slane %v419, 4
        %v644 = vsel %vm612, %v643, %v642
        %v645 = vrot.slane %v421, 3
        %v646 = vsel %vm615, %v645, %v644
        %v647 = vrot.slane %v423, 2
        %v648 = vsel %vm618, %v647, %v646
        %v649 = vrot.slane %v425, 1
        %v650 = vsel %vm621, %v649, %v648
        %v651 = vrot.slane %v445, 7
        %v652 = vsel %vm603, %v651, %v443
        %v653 = vrot.slane %v447, 6
        %v654 = vsel %vm606, %v653, %v652
        %v655 = vrot.slane %v449, 5
        %v656 = vsel %vm609, %v655, %v654
        %v657 = vrot.slane %v451, 4
        %v658 = vsel %vm612, %v657, %v656
        %v659 = vrot.slane %v453, 3
        %v660 = vsel %vm615, %v659, %v658
        %v661 = vrot.slane %v455, 2
        %v662 = vsel %vm618, %v661, %v660
        %v663 = vrot.slane %v457, 1
        %v664 = vsel %vm621, %v663, %v662
        %v665 = vrot.slane %v477, 7
        %v666 = vsel %vm603, %v665, %v475
        %v667 = vrot.slane %v479, 6
        %v668 = vsel %vm606, %v667, %v666
        %v669 = vrot.slane %v481, 5
        %v670 = vsel %vm609, %v669, %v668
        %v671 = vrot.slane %v483, 4
        %v672 = vsel %vm612, %v671, %v670
        %v673 = vrot.slane %v485, 3
        %v674 = vsel %vm615, %v673, %v672
        %v675 = vrot.slane %v487, 2
        %v676 = vsel %vm618, %v675, %v674
        %v677 = vrot.slane %v489, 1
        %v678 = vsel %vm621, %v677, %v676
        %v679 = vrot.slane %v509, 7
        %v680 = vsel %vm603, %v679, %v507
        %v681 = vrot.slane %v511, 6
        %v682 = vsel %vm606, %v681, %v680
        %v683 = vrot.slane %v513, 5
        %v684 = vsel %vm609, %v683, %v682
        %v685 = vrot.slane %v515, 4
        %v686 = vsel %vm612, %v685, %v684
        %v687 = vrot.slane %v517, 3
        %v688 = vsel %vm615, %v687, %v686
        %v689 = vrot.slane %v519, 2
        %v690 = vsel %vm618, %v689, %v688
        %v691 = vrot.slane %v521, 1
        %v692 = vsel %vm621, %v691, %v690
        %v693 = vrot.slane %v541, 7
        %v694 = vsel %vm603, %v693, %v539
        %v695 = vrot.slane %v543, 6
        %v696 = vsel %vm606, %v695, %v694
        %v697 = vrot.slane %v545, 5
        %v698 = vsel %vm609, %v697, %v696
        %v699 = vrot.slane %v547, 4
        %v700 = vsel %vm612, %v699, %v698
        %v701 = vrot.slane %v549, 3
        %v702 = vsel %vm615, %v701, %v700
        %v703 = vrot.slane %v551, 2
        %v704 = vsel %vm618, %v703, %v702
        %v705 = vrot.slane %v553, 1
        %v706 = vsel %vm621, %v705, %v704
        %v707 = vrot.slane %v573, 7
        %v708 = vsel %vm603, %v707, %v571
        %v709 = vrot.slane %v575, 6
        %v710 = vsel %vm606, %v709, %v708
        %v711 = vrot.slane %v577, 5
        %v712 = vsel %vm609, %v711, %v710
        %v713 = vrot.slane %v579, 4
        %v714 = vsel %vm612, %v713, %v712
        %v715 = vrot.slane %v581, 3
        %v716 = vsel %vm615, %v715, %v714
        %v717 = vrot.slane %v583, 2
        %v718 = vsel %vm618, %v717, %v716
        %v719 = vrot.slane %v585, 1
        %v720 = vsel %vm621, %v719, %v718
        %v721 = vrot.slane %v319, 7
        %v722 = vsel %vm603, %v721, %v312
        %v723 = vrot.slane %v326, 6
        %v724 = vsel %vm606, %v723, %v722
        %v725 = vrot.slane %v333, 5
        %v726 = vsel %vm609, %v725, %v724
        %v727 = vrot.slane %v340, 4
        %v728 = vsel %vm612, %v727, %v726
        %v729 = vrot.slane %v347, 3
        %v730 = vsel %vm615, %v729, %v728
        %v731 = vrot.slane %v354, 2
        %v732 = vsel %vm618, %v731, %v730
        %v733 = vrot.slane %v361, 1
        %v734 = vsel %vm621, %v733, %v732
        %v735 = vrot.slane %v397, 7
        %v736 = vsel %vm603, %v735, %v395
        %v737 = vrot.slane %v399, 6
        %v738 = vsel %vm606, %v737, %v736
        %v739 = vrot.slane %v401, 5
        %v740 = vsel %vm609, %v739, %v738
        %v741 = vrot.slane %v403, 4
        %v742 = vsel %vm612, %v741, %v740
        %v743 = vrot.slane %v405, 3
        %v744 = vsel %vm615, %v743, %v742
        %v745 = vrot.slane %v407, 2
        %v746 = vsel %vm618, %v745, %v744
        %v747 = vrot.slane %v409, 1
        %v748 = vsel %vm621, %v747, %v746
        %v749 = vrot.slane %v429, 7
        %v750 = vsel %vm603, %v749, %v427
        %v751 = vrot.slane %v431, 6
        %v752 = vsel %vm606, %v751, %v750
        %v753 = vrot.slane %v433, 5
        %v754 = vsel %vm609, %v753, %v752
        %v755 = vrot.slane %v435, 4
        %v756 = vsel %vm612, %v755, %v754
        %v757 = vrot.slane %v437, 3
        %v758 = vsel %vm615, %v757, %v756
        %v759 = vrot.slane %v439, 2
        %v760 = vsel %vm618, %v759, %v758
        %v761 = vrot.slane %v441, 1
        %v762 = vsel %vm621, %v761, %v760
        %v763 = vrot.slane %v461, 7
        %v764 = vsel %vm603, %v763, %v459
        %v765 = vrot.slane %v463, 6
        %v766 = vsel %vm606, %v765, %v764
        %v767 = vrot.slane %v465, 5
        %v768 = vsel %vm609, %v767, %v766
        %v769 = vrot.slane %v467, 4
        %v770 = vsel %vm612, %v769, %v768
        %v771 = vrot.slane %v469, 3
        %v772 = vsel %vm615, %v771, %v770
        %v773 = vrot.slane %v471, 2
        %v774 = vsel %vm618, %v773, %v772
        %v775 = vrot.slane %v473, 1
        %v776 = vsel %vm621, %v775, %v774
        %v777 = vrot.slane %v493, 7
        %v778 = vsel %vm603, %v777, %v491
        %v779 = vrot.slane %v495, 6
        %v780 = vsel %vm606, %v779, %v778
        %v781 = vrot.slane %v497, 5
        %v782 = vsel %vm609, %v781, %v780
        %v783 = vrot.slane %v499, 4
        %v784 = vsel %vm612, %v783, %v782
        %v785 = vrot.slane %v501, 3
        %v786 = vsel %vm615, %v785, %v784
        %v787 = vrot.slane %v503, 2
        %v788 = vsel %vm618, %v787, %v786
        %v789 = vrot.slane %v505, 1
        %v790 = vsel %vm621, %v789, %v788
        %v791 = vrot.slane %v525, 7
        %v792 = vsel %vm603, %v791, %v523
        %v793 = vrot.slane %v527, 6
        %v794 = vsel %vm606, %v793, %v792
        %v795 = vrot.slane %v529, 5
        %v796 = vsel %vm609, %v795, %v794
        %v797 = vrot.slane %v531, 4
        %v798 = vsel %vm612, %v797, %v796
        %v799 = vrot.slane %v533, 3
        %v800 = vsel %vm615, %v799, %v798
        %v801 = vrot.slane %v535, 2
        %v802 = vsel %vm618, %v801, %v800
        %v803 = vrot.slane %v537, 1
        %v804 = vsel %vm621, %v803, %v802
        %v805 = vrot.slane %v557, 7
        %v806 = vsel %vm603, %v805, %v555
        %v807 = vrot.slane %v559, 6
        %v808 = vsel %vm606, %v807, %v806
        %v809 = vrot.slane %v561, 5
        %v810 = vsel %vm609, %v809, %v808
        %v811 = vrot.slane %v563, 4
        %v812 = vsel %vm612, %v811, %v810
        %v813 = vrot.slane %v565, 3
        %v814 = vsel %vm615, %v813, %v812
        %v815 = vrot.slane %v567, 2
        %v816 = vsel %vm618, %v815, %v814
        %v817 = vrot.slane %v569, 1
        %v818 = vsel %vm621, %v817, %v816
        %v819 = vrot.slane %v589, 7
        %v820 = vsel %vm603, %v819, %v587
        %v821 = vrot.slane %v591, 6
        %v822 = vsel %vm606, %v821, %v820
        %v823 = vrot.slane %v593, 5
        %v824 = vsel %vm609, %v823, %v822
        %v825 = vrot.slane %v595, 4
        %v826 = vsel %vm612, %v825, %v824
        %v827 = vrot.slane %v597, 3
        %v828 = vsel %vm615, %v827, %v826
        %v829 = vrot.slane %v599, 2
        %v830 = vsel %vm618, %v829, %v828
        %v831 = vrot.slane %v601, 1
        %v832 = vsel %vm621, %v831, %v830
        %v849 = vcombine.low %v622, %v650
        %v850 = vcombine.high %v622, %v650
        %v852 = vunpack.c.l.s4 1983009808
        %v853 = vunpack.c.0.s8 %v852
        %v854 = vlaneseq
        %v855 = vshrl.u32 %v854, 7
        %v856 = vsub.s32 %v853, %v855
        %v857 = vrot.slane %v849, %v856
        %v859 = vunpack.c.l.s4 1983009808
        %v860 = vunpack.c.0.s8 %v859
        %v861 = vlaneseq
        %v862 = vshrl.u32 %v861, 7
        %v863 = vsub.s32 %v860, %v862
        %v864 = vrot.slane %v850, %v863
        %v865 = vcombine.low %v636, %v664
        %v866 = vcombine.high %v636, %v664
        %v868 = vunpack.c.l.s4 1983009808
        %v869 = vunpack.c.0.s8 %v868
        %v870 = vlaneseq
        %v871 = vshrl.u32 %v870, 7
        %v872 = vsub.s32 %v869, %v871
        %v873 = vrot.slane %v865, %v872
        %v875 = vunpack.c.l.s4 1983009808
        %v876 = vunpack.c.0.s8 %v875
        %v877 = vlaneseq
        %v878 = vshrl.u32 %v877, 7
        %v879 = vsub.s32 %v876, %v878
        %v880 = vrot.slane %v866, %v879
        %v881 = vcombine.low %v678, %v706
        %v882 = vcombine.high %v678, %v706
        %v884 = vunpack.c.l.s4 1983009808
        %v885 = vunpack.c.0.s8 %v884
        %v886 = vlaneseq
        %v887 = vshrl.u32 %v886, 7
        %v888 = vsub.s32 %v885, %v887
        %v889 = vrot.slane %v881, %v888
        %v891 = vunpack.c.l.s4 1983009808
        %v892 = vunpack.c.0.s8 %v891
        %v893 = vlaneseq
        %v894 = vshrl.u32 %v893, 7
        %v895 = vsub.s32 %v892, %v894
        %v896 = vrot.slane %v882, %v895
        %v897 = vcombine.low %v692, %v720
        %v898 = vcombine.high %v692, %v720
        %v900 = vunpack.c.l.s4 1983009808
        %v901 = vunpack.c.0.s8 %v900
        %v902 = vlaneseq
        %v903 = vshrl.u32 %v902, 7
        %v904 = vsub.s32 %v901, %v903
        %v905 = vrot.slane %v897, %v904
        %v907 = vunpack.c.l.s4 1983009808
        %v908 = vunpack.c.0.s8 %v907
        %v909 = vlaneseq
        %v910 = vshrl.u32 %v909, 7
        %v911 = vsub.s32 %v908, %v910
        %v912 = vrot.slane %v898, %v911
        %v913 = vcombine.low %v857, %v873
        %v914 = vcombine.high %v857, %v873
        %v916 = vunpack.c.l.s4 1934713408
        %v917 = vunpack.c.0.s8 %v916
        %v918 = vlaneseq
        %v919 = vshrl.u32 %v918, 7
        %v920 = vsub.s32 %v917, %v919
        %v921 = vrot.slane %v913, %v920
        %v923 = vunpack.c.l.s4 1934713408
        %v924 = vunpack.c.0.s8 %v923
        %v925 = vlaneseq
        %v926 = vshrl.u32 %v925, 7
        %v927 = vsub.s32 %v924, %v926
        %v928 = vrot.slane %v914, %v927
        %v929 = vcombine.low %v864, %v880
        %v930 = vcombine.high %v864, %v880
        %v932 = vunpack.c.l.s4 1934713408
        %v933 = vunpack.c.0.s8 %v932
        %v934 = vlaneseq
        %v935 = vshrl.u32 %v934, 7
        %v936 = vsub.s32 %v933, %v935
        %v937 = vrot.slane %v929, %v936
        %v939 = vunpack.c.l.s4 1934713408
        %v940 = vunpack.c.0.s8 %v939
        %v941 = vlaneseq
        %v942 = vshrl.u32 %v941, 7
        %v943 = vsub.s32 %v940, %v942
        %v944 = vrot.slane %v930, %v943
        %v945 = vcombine.low %v889, %v905
        %v946 = vcombine.high %v889, %v905
        %v948 = vunpack.c.l.s4 1934713408
        %v949 = vunpack.c.0.s8 %v948
        %v950 = vlaneseq
        %v951 = vshrl.u32 %v950, 7
        %v952 = vsub.s32 %v949, %v951
        %v953 = vrot.slane %v945, %v952
        %v955 = vunpack.c.l.s4 1934713408
        %v956 = vunpack.c.0.s8 %v955
        %v957 = vlaneseq
        %v958 = vshrl.u32 %v957, 7
        %v959 = vsub.s32 %v956, %v958
        %v960 = vrot.slane %v946, %v959
        %v961 = vcombine.low %v896, %v912
        %v962 = vcombine.high %v896, %v912
        %v964 = vunpack.c.l.s4 1934713408
        %v965 = vunpack.c.0.s8 %v964
        %v966 = vlaneseq
        %v967 = vshrl.u32 %v966, 7
        %v968 = vsub.s32 %v965, %v967
        %v969 = vrot.slane %v961, %v968
        %v971 = vunpack.c.l.s4 1934713408
        %v972 = vunpack.c.0.s8 %v971
        %v973 = vlaneseq
        %v974 = vshrl.u32 %v973, 7
        %v975 = vsub.s32 %v972, %v974
        %v976 = vrot.slane %v962, %v975
        %v977 = vcombine.low %v921, %v953
        %v978 = vcombine.high %v921, %v953
        %v979 = vcombine.low %v928, %v960
        %v980 = vcombine.high %v928, %v960
        %v981 = vcombine.low %v937, %v969
        %v982 = vcombine.high %v937, %v969
        %v983 = vcombine.low %v944, %v976
        %v984 = vcombine.high %v944, %v976
        %v985 = vcombine.low %v734, %v762
        %v986 = vcombine.high %v734, %v762
        %v988 = vunpack.c.l.s4 1983009808
        %v989 = vunpack.c.0.s8 %v988
        %v990 = vlaneseq
        %v991 = vshrl.u32 %v990, 7
        %v992 = vsub.s32 %v989, %v991
        %v993 = vrot.slane %v985, %v992
        %v995 = vunpack.c.l.s4 1983009808
        %v996 = vunpack.c.0.s8 %v995
        %v997 = vlaneseq
        %v998 = vshrl.u32 %v997, 7
        %v999 = vsub.s32 %v996, %v998
        %v1000 = vrot.slane %v986, %v999
        %v1001 = vcombine.low %v748, %v776
        %v1002 = vcombine.high %v748, %v776
        %v1004 = vunpack.c.l.s4 1983009808
        %v1005 = vunpack.c.0.s8 %v1004
        %v1006 = vlaneseq
        %v1007 = vshrl.u32 %v1006, 7
        %v1008 = vsub.s32 %v1005, %v1007
        %v1009 = vrot.slane %v1001, %v1008
        %v1011 = vunpack.c.l.s4 1983009808
        %v1012 = vunpack.c.0.s8 %v1011
        %v1013 = vlaneseq
        %v1014 = vshrl.u32 %v1013, 7
        %v1015 = vsub.s32 %v1012, %v1014
        %v1016 = vrot.slane %v1002, %v1015
        %v1017 = vcombine.low %v790, %v818
        %v1018 = vcombine.high %v790, %v818
        %v1020 = vunpack.c.l.s4 1983009808
        %v1021 = vunpack.c.0.s8 %v1020
        %v1022 = vlaneseq
        %v1023 = vshrl.u32 %v1022, 7
        %v1024 = vsub.s32 %v1021, %v1023
        %v1025 = vrot.slane %v1017, %v1024
        %v1027 = vunpack.c.l.s4 1983009808
        %v1028 = vunpack.c.0.s8 %v1027
        %v1029 = vlaneseq
        %v1030 = vshrl.u32 %v1029, 7
        %v1031 = vsub.s32 %v1028, %v1030
        %v1032 = vrot.slane %v1018, %v1031
        %v1033 = vcombine.low %v804, %v832
        %v1034 = vcombine.high %v804, %v832
        %v1036 = vunpack.c.l.s4 1983009808
        %v1037 = vunpack.c.0.s8 %v1036
        %v1038 = vlaneseq
        %v1039 = vshrl.u32 %v1038, 7
        %v1040 = vsub.s32 %v1037, %v1039
        %v1041 = vrot.slane %v1033, %v1040
        %v1043 = vunpack.c.l.s4 1983009808
        %v1044 = vunpack.c.0.s8 %v1043
        %v1045 = vlaneseq
        %v1046 = vshrl.u32 %v1045, 7
        %v1047 = vsub.s32 %v1044, %v1046
        %v1048 = vrot.slane %v1034, %v1047
        %v1049 = vcombine.low %v993, %v1009
        %v1050 = vcombine.high %v993, %v1009
        %v1052 = vunpack.c.l.s4 1934713408
        %v1053 = vunpack.c.0.s8 %v1052
        %v1054 = vlaneseq
        %v1055 = vshrl.u32 %v1054, 7
        %v1056 = vsub.s32 %v1053, %v1055
        %v1057 = vrot.slane %v1049, %v1056
        %v1059 = vunpack.c.l.s4 1934713408
        %v1060 = vunpack.c.0.s8 %v1059
        %v1061 = vlaneseq
        %v1062 = vshrl.u32 %v1061, 7
        %v1063 = vsub.s32 %v1060, %v1062
        %v1064 = vrot.slane %v1050, %v1063
        %v1065 = vcombine.low %v1000, %v1016
        %v1066 = vcombine.high %v1000, %v1016
        %v1068 = vunpack.c.l.s4 1934713408
        %v1069 = vunpack.c.0.s8 %v1068
        %v1070 = vlaneseq
        %v1071 = vshrl.u32 %v1070, 7
        %v1072 = vsub.s32 %v1069, %v1071
        %v1073 = vrot.slane %v1065, %v1072
        %v1075 = vunpack.c.l.s4 1934713408
        %v1076 = vunpack.c.0.s8 %v1075
        %v1077 = vlaneseq
        %v1078 = vshrl.u32 %v1077, 7
        %v1079 = vsub.s32 %v1076, %v1078
        %v1080 = vrot.slane %v1066, %v1079
        %v1081 = vcombine.low %v1025, %v1041
        %v1082 = vcombine.high %v1025, %v1041
        %v1084 = vunpack.c.l.s4 1934713408
        %v1085 = vunpack.c.0.s8 %v1084
        %v1086 = vlaneseq
        %v1087 = vshrl.u32 %v1086, 7
        %v1088 = vsub.s32 %v1085, %v1087
        %v1089 = vrot.slane %v1081, %v1088
        %v1091 = vunpack.c.l.s4 1934713408
        %v1092 = vunpack.c.0.s8 %v1091
        %v1093 = vlaneseq
        %v1094 = vshrl.u32 %v1093, 7
        %v1095 = vsub.s32 %v1092, %v1094
        %v1096 = vrot.slane %v1082, %v1095
        %v1097 = vcombine.low %v1032, %v1048
        %v1098 = vcombine.high %v1032, %v1048
        %v1100 = vunpack.c.l.s4 1934713408
        %v1101 = vunpack.c.0.s8 %v1100
        %v1102 = vlaneseq
        %v1103 = vshrl.u32 %v1102, 7
        %v1104 = vsub.s32 %v1101, %v1103
        %v1105 = vrot.slane %v1097, %v1104
        %v1107 = vunpack.c.l.s4 1934713408
        %v1108 = vunpack.c.0.s8 %v1107
        %v1109 = vlaneseq
        %v1110 = vshrl.u32 %v1109, 7
        %v1111 = vsub.s32 %v1108, %v1110
        %v1112 = vrot.slane %v1098, %v1111
        %v1113 = vcombine.low %v1057, %v1089
        %v1114 = vcombine.high %v1057, %v1089
        %v1115 = vcombine.low %v1064, %v1096
        %v1116 = vcombine.high %v1064, %v1096
        %v1117 = vcombine.low %v1073, %v1105
        %v1118 = vcombine.high %v1073, %v1105
        %v1119 = vcombine.low %v1080, %v1112
        %v1120 = vcombine.high %v1080, %v1112
        %vm1121 = vcmask 15360
        %v1122 = vsel %vm1121, %v977, -inf
        %1123 = vmax.xlane.f32.xlu0 %v1122
        %v1124 = vpop.xlane.xlu0 %1123
        %v1125 = vsel %vm1121, %v978, -inf
        %1126 = vmax.xlane.f32.xlu0 %v1125
        %v1127 = vpop.xlane.xlu0 %1126
        %v1128 = vsel %vm1121, %v979, -inf
        %1129 = vmax.xlane.f32.xlu0 %v1128
        %v1130 = vpop.xlane.xlu0 %1129
        %v1131 = vsel %vm1121, %v980, -inf
        %1132 = vmax.xlane.f32.xlu0 %v1131
        %v1133 = vpop.xlane.xlu0 %1132
        %v1134 = vsel %vm1121, %v981, -inf
        %1135 = vmax.xlane.f32.xlu0 %v1134
        %v1136 = vpop.xlane.xlu0 %1135
        %v1137 = vsel %vm1121, %v982, -inf
        %1138 = vmax.xlane.f32.xlu0 %v1137
        %v1139 = vpop.xlane.xlu0 %1138
        %v1140 = vsel %vm1121, %v983, -inf
        %1141 = vmax.xlane.f32.xlu0 %v1140
        %v1142 = vpop.xlane.xlu0 %1141
        %v1143 = vsel %vm1121, %v984, -inf
        %1144 = vmax.xlane.f32.xlu0 %v1143
        %v1145 = vpop.xlane.xlu0 %1144
        %v1146 = vsel %vm1121, %v1113, -inf
        %1147 = vmax.xlane.f32.xlu0 %v1146
        %v1148 = vpop.xlane.xlu0 %1147
        %v1149 = vsel %vm1121, %v1114, -inf
        %1150 = vmax.xlane.f32.xlu0 %v1149
        %v1151 = vpop.xlane.xlu0 %1150
        %v1152 = vsel %vm1121, %v1115, -inf
        %1153 = vmax.xlane.f32.xlu0 %v1152
        %v1154 = vpop.xlane.xlu0 %1153
        %v1155 = vsel %vm1121, %v1116, -inf
        %1156 = vmax.xlane.f32.xlu0 %v1155
        %v1157 = vpop.xlane.xlu0 %1156
        %v1158 = vsel %vm1121, %v1117, -inf
        %1159 = vmax.xlane.f32.xlu0 %v1158
        %v1160 = vpop.xlane.xlu0 %1159
        %v1161 = vsel %vm1121, %v1118, -inf
        %1162 = vmax.xlane.f32.xlu0 %v1161
        %v1163 = vpop.xlane.xlu0 %1162
        %v1164 = vsel %vm1121, %v1119, -inf
        %1165 = vmax.xlane.f32.xlu0 %v1164
        %v1166 = vpop.xlane.xlu0 %1165
        %v1167 = vsel %vm1121, %v1120, -inf
        %1168 = vmax.xlane.f32.xlu0 %v1167
        %v1169 = vpop.xlane.xlu0 %1168
        %v1186 = vlaneseq
        %v1187 = vand.u32 %v1186, 127
        %v1188 = vlaneseq
        %v1189 = vshrl.u32 %v1188, 7
        %v1190 = vsub.s32 %v1187, %v1189
        %v1191 = vrot.slane %v1124, %v1190
        %v1192 = vlaneseq
        %v1193 = vshrl.u32 %v1192, 7
        %v1194 = vsub.s32 %v1187, %v1193
        %v1195 = vrot.slane %v1127, %v1194
        %v1196 = vlaneseq
        %v1197 = vshrl.u32 %v1196, 7
        %v1198 = vsub.s32 %v1187, %v1197
        %v1199 = vrot.slane %v1130, %v1198
        %v1200 = vlaneseq
        %v1201 = vshrl.u32 %v1200, 7
        %v1202 = vsub.s32 %v1187, %v1201
        %v1203 = vrot.slane %v1133, %v1202
        %v1204 = vlaneseq
        %v1205 = vshrl.u32 %v1204, 7
        %v1206 = vsub.s32 %v1187, %v1205
        %v1207 = vrot.slane %v1136, %v1206
        %v1208 = vlaneseq
        %v1209 = vshrl.u32 %v1208, 7
        %v1210 = vsub.s32 %v1187, %v1209
        %v1211 = vrot.slane %v1139, %v1210
        %v1212 = vlaneseq
        %v1213 = vshrl.u32 %v1212, 7
        %v1214 = vsub.s32 %v1187, %v1213
        %v1215 = vrot.slane %v1142, %v1214
        %v1216 = vlaneseq
        %v1217 = vshrl.u32 %v1216, 7
        %v1218 = vsub.s32 %v1187, %v1217
        %v1219 = vrot.slane %v1145, %v1218
        %v1220 = vlaneseq
        %v1221 = vshrl.u32 %v1220, 7
        %v1222 = vsub.s32 %v1187, %v1221
        %v1223 = vrot.slane %v1148, %v1222
        %v1224 = vlaneseq
        %v1225 = vshrl.u32 %v1224, 7
        %v1226 = vsub.s32 %v1187, %v1225
        %v1227 = vrot.slane %v1151, %v1226
        %v1228 = vlaneseq
        %v1229 = vshrl.u32 %v1228, 7
        %v1230 = vsub.s32 %v1187, %v1229
        %v1231 = vrot.slane %v1154, %v1230
        %v1232 = vlaneseq
        %v1233 = vshrl.u32 %v1232, 7
        %v1234 = vsub.s32 %v1187, %v1233
        %v1235 = vrot.slane %v1157, %v1234
        %v1236 = vlaneseq
        %v1237 = vshrl.u32 %v1236, 7
        %v1238 = vsub.s32 %v1187, %v1237
        %v1239 = vrot.slane %v1160, %v1238
        %v1240 = vlaneseq
        %v1241 = vshrl.u32 %v1240, 7
        %v1242 = vsub.s32 %v1187, %v1241
        %v1243 = vrot.slane %v1163, %v1242
        %v1244 = vlaneseq
        %v1245 = vshrl.u32 %v1244, 7
        %v1246 = vsub.s32 %v1187, %v1245
        %v1247 = vrot.slane %v1166, %v1246
        %v1248 = vlaneseq
        %v1249 = vshrl.u32 %v1248, 7
        %v1250 = vsub.s32 %v1187, %v1249
        %v1251 = vrot.slane %v1169, %v1250
        %v1252 = vsel %vm603, %v1195, %v1191
        %v1253 = vsel %vm606, %v1199, %v1252
        %v1254 = vsel %vm609, %v1203, %v1253
        %v1255 = vsel %vm612, %v1207, %v1254
        %v1256 = vsel %vm615, %v1211, %v1255
        %v1257 = vsel %vm618, %v1215, %v1256
        %v1258 = vsel %vm621, %v1219, %v1257
        %v1259 = vsel %vm603, %v1227, %v1223
        %v1260 = vsel %vm606, %v1231, %v1259
        %v1261 = vsel %vm609, %v1235, %v1260
        %v1262 = vsel %vm612, %v1239, %v1261
        %v1263 = vsel %vm615, %v1243, %v1262
        %v1264 = vsel %vm618, %v1247, %v1263
        %v1265 = vsel %vm621, %v1251, %v1264
        %vm1268 = vcmask 64512
        %1269 = vst.msk [vmem:[%s153] sm:$0xff] %vm1268, %v1258
        %1270 = vst.msk [vmem:[%s153 + $0x8] sm:$0xff] %vm1268, %v1265
        %s1271 = sand.u32 %s68, 1
        %s1272 = scalar_lea.sflag [#allocation4], %s1271
        %s1273 = sand.u32 %s68, 1
        %s1274 = smul.addr %s1273, 16
        %s1275 = scalar_lea.vmem [#allocation5], %s1274
        // Predicated region
        $region29: #{tpu_custom_call.1} parent=23 // pred_check
          %p1276 = pneg %p78
        $region30: #{tpu_custom_call.1} parent=23 // pred_check_branch
          %1278 = sbr.rel (%p1276) target = $region32
        $region31: #{tpu_custom_call.1} parent=23 // pred_region
          %s1279 = smul.u32 2, %s22
          %s1281 = ssub.s32 256, 256
          %1282 = vsyncadd %s1272, %s1281
          %s1283 = sadd.s32 %s23, %s1279
          %s1284 = smul.addr %s1283, 128
          %s1285 = scalar_lea.hbm %s1, %s1284
          %s1286 = sshll.u32 %s1275, 4
          %s1287 = int_to_ptr.vmem [resolvable:$true] %s1286
          %1292 = dma.vmem_to_hbm [thread:$0]  %s1287, 256, %s1285, %s1272, 128, 128, 8
        $region32: #{tpu_custom_call.1} parent=23 // pred_fallthru
          _
      $region24: #{tpu_custom_call.1} parent=5 // pred_fallthru
        _
      %p1293 = scmp.le.s32.totalorder 2, %s13
      // Predicated region
      $region33: #{tpu_custom_call.1} parent=5 // pred_check
        %p1294 = pneg %p1293
      $region34: #{tpu_custom_call.1} parent=5 // pred_check_branch
        %1296 = sbr.rel (%p1294) target = $region36
      $region35: #{tpu_custom_call.1} parent=5 // pred_region
        %s1297 = ssub.s32 %s13, 2
        // Predicated region
        $region37: #{tpu_custom_call.1} parent=35 // pred_check
          %p1298 = pneg %p84
        $region38: #{tpu_custom_call.1} parent=35 // pred_check_branch
          %1300 = sbr.rel (%p1298) target = $region40
        $region39: #{tpu_custom_call.1} parent=35 // pred_region
          %s1301 = sand.u32 %s69, 1
          %s1302 = scalar_lea.sflag [#allocation4], %s1301
          %s1303 = sand.u32 %s69, 1
          %s1304 = smul.addr %s1303, 16
          %s1305 = scalar_lea.vmem [#allocation5], %s1304
          %1306 = dma.done %s1302, 256
        $region40: #{tpu_custom_call.1} parent=35 // pred_fallthru
          _
      $region36: #{tpu_custom_call.1} parent=5 // pred_fallthru
        _
    $region6: #{tpu_custom_call.1} parent=1 // loop_footer
      %s17 = sadd.s32 1, %s13
    $region7: #{tpu_custom_call.1} parent=1 // loop_footer_branch
      %12 = sbr.rel target = $region3
    $region8: #{tpu_custom_call.1} parent=1 // loop_exit
      _
    %1307 = vsyncpa [#allocation3], 1
    %s1308 = scalar_lea.sflag [#allocation3], 1
    %1309 = vsyncpa %s1308, 1
    %1310 = vsyncpa [#allocation4], 1
    %s1311 = scalar_lea.sflag [#allocation4], 1
    %1312 = vsyncpa %s1311, 1

</llo_original>
